<compile_context>
chip_gen: v6e
topology: v6e:2x2x1
jax: 0.10.0
libtpu: 0.0.40
codegen_flags: <defaults>
</compile_context>

<pallas_src>
import jax
import jax.numpy as jnp
from jax.experimental import pallas as pl
from jax.experimental.pallas import tpu as pltpu

LANES = 128


def time2vec_kernel(wl_ref, bl_ref, t_ref, e_ref, o_ref):
    """One grid step.

    wl_ref, bl_ref : VMEM (1, C*128)    per-lane fused weight/bias, w[j % C].
    t_ref          : VMEM (tile, 128)   lane-dense slab of time values.
    e_ref          : VMEM (128, C*128)  bf16 0/1 selection matrix, E[l, j] = (l == j // C).
    o_ref          : VMEM (tile, C*128) output block in final flat (n*C + c) order.
    """
    L = t_ref.shape[-1]
    CL = o_ref.shape[-1]
    C = CL // L

    t = t_ref[...]                                   # (tile, 128) f32
    e = e_ref[...]                                   # (128, CL)   bf16 (exact 0/1)

    # Lane expansion on the MXU: t_rep[:, j] = t[:, j // C].
    # Split t into three bf16 terms so every MXU pass multiplies exactly
    # representable bf16 values by an exact 0/1 matrix -> f32-accurate result
    # independent of default matmul precision.  Three bf16 passes are cheap
    # and hidden under the output DMA (kernel is HBM-write bound).
    t_rep = None
    r = t
    for _ in range(3):
        hi = r.astype(jnp.bfloat16)
        part = jnp.dot(hi, e, preferred_element_type=jnp.float32)
        t_rep = part if t_rep is None else t_rep + part
        r = r - hi.astype(jnp.float32)

    pre = wl_ref[...] * t_rep + bl_ref[...]          # (tile, CL)
    lane = jax.lax.broadcasted_iota(jnp.int32, pre.shape, 1)
    # Channel 0 (lane % C == 0) is the linear term; channels >= 1 are periodic.
    o_ref[...] = jnp.where(lane % C == 0, pre, jnp.sin(pre))


def time2vec(t, lin_weight, lin_bias, per_weight=None, per_bias=None, *,
             vmem_block_budget_bytes=20 * 2**20, max_tile_rows=4096):
    """t: (B, T, 1) -> (B, T, out_channels) float32."""
    B, T, one = t.shape
    assert one == 1, "Time2Vec expects trailing dim of size 1"

    if per_weight is not None:
        w = jnp.concatenate([jnp.asarray(lin_weight),
                             jnp.asarray(per_weight)]).astype(jnp.float32)
        b = jnp.concatenate([jnp.asarray(lin_bias),
                             jnp.asarray(per_bias)]).astype(jnp.float32)
    else:
        w = jnp.asarray(lin_weight).astype(jnp.float32)
        b = jnp.asarray(lin_bias).astype(jnp.float32)
    C = int(w.shape[0])
    CL = C * LANES

    # Per-lane params for the interleaved flat (n*C + c) layout:
    # output lane j holds channel j % C of time index (row*128 + j // C).
    w_lane = jnp.tile(w, LANES).reshape(1, CL)
    b_lane = jnp.tile(b, LANES).reshape(1, CL)
    # Exact 0/1 lane-expansion matrix (bf16 -> single native MXU pass each).
    e = (jnp.arange(LANES, dtype=jnp.int32)[:, None]
         == (jnp.arange(CL, dtype=jnp.int32)[None, :] // C)).astype(jnp.bfloat16)

    N = B * T
    rows_needed = pl.cdiv(N, LANES)

    # --- VMEM-aware tile (in rows of 128 time values), multiple of 8. ---
    # Double-buffered input (tile,128) + output (tile, C*128) blocks per step.
    bytes_per_row = 2 * (LANES + CL) * 4
    tile = min(max_tile_rows, max(8, vmem_block_budget_bytes // bytes_per_row))
    tile = max(8, (tile // 8) * 8)
    rows_needed8 = ((rows_needed + 7) // 8) * 8
    tile = min(tile, rows_needed8)
    rows = pl.cdiv(rows_needed, tile) * tile
    n_pad = rows * LANES

    t_flat = t.reshape(N).astype(jnp.float32)
    if n_pad != N:                               # skip the pad copy when aligned
        t_flat = jnp.pad(t_flat, (0, n_pad - N))
    t2 = t_flat.reshape(rows, LANES)             # lane-dense input slab

    grid = (rows // tile,)

    # Explicit scoped-VMEM limit: resident blocks + headroom, capped well
    # below v7x's 64 MiB physical VMEM (v5e's 16 MiB default would otherwise
    # bind at large tiles / wide C).
    block_bytes = (2 * tile * (LANES + CL) * 4   # t + out, double-buffered
                   + 2 * LANES * CL * 2          # E (bf16)
                   + 2 * 2 * CL * 4)             # w_lane, b_lane
    vmem_limit = int(min(40 * 2**20, max(16 * 2**20, block_bytes + 8 * 2**20)))

    cost = pl.CostEstimate(
        flops=int(3 * 2 * rows * LANES * CL + 4 * rows * CL),
        transcendentals=int(rows * CL),
        bytes_accessed=int(4 * n_pad + 4 * rows * CL + 2 * LANES * CL + 8 * CL),
    )

    out = pl.pallas_call(
        time2vec_kernel,
        out_shape=jax.ShapeDtypeStruct((rows, CL), jnp.float32),
        grid=grid,
        in_specs=[
            pl.BlockSpec((1, CL), lambda i: (0, 0)),        # w_lane (resident)
            pl.BlockSpec((1, CL), lambda i: (0, 0)),        # b_lane (resident)
            pl.BlockSpec((tile, LANES), lambda i: (i, 0)),  # t slab (pipelined)
            pl.BlockSpec((LANES, CL), lambda i: (0, 0)),    # E (resident)
        ],
        out_specs=pl.BlockSpec((tile, CL), lambda i: (i, 0)),
        compiler_params=pltpu.CompilerParams(
            dimension_semantics=("parallel",),  # shard row tiles across TCs on v7x
            vmem_limit_bytes=vmem_limit,
        ),
        cost_estimate=cost,
    )(w_lane, b_lane, t2, e)

    # (rows, C*128) -> (rows*128, C) is a pure row-major reshape: no transpose,
    # no extra HBM round trip.  Slice only in the ragged (N % 128 != 0) case.
    flat = out.reshape(rows * LANES, C)
    if n_pad != N:
        flat = flat[:N]
    return flat.reshape(B, T, C)


def time2vec_ref(t, lin_weight, lin_bias, per_weight, per_bias):
    """Pure-JAX reference mirroring the PyTorch forward."""
    t_lin = lin_weight * t + lin_bias                       # (B, T, 1)
    if per_weight is None:
        return t_lin
    alpha = per_weight[None, :]                             # (1, K)
    beta = per_bias[None, :]                                # (1, K)
    t_per = jnp.sin(alpha * t + beta)                       # (B, T, K)
    return jnp.concatenate([t_lin, t_per], axis=-1)


if __name__ == "__main__":
    out_channels = 3
    B, T = 2, 8

    key = jax.random.PRNGKey(0)
    k1, k2, k3, k4, k5 = jax.random.split(key, 5)

    # Deterministic "randn" parameter init (shapes from Time2Vec.__init__).
    lin_weight = jax.random.normal(k1, (1,), dtype=jnp.float32)
    lin_bias = jax.random.normal(k2, (1,), dtype=jnp.float32)
    per_weight = jax.random.normal(k3, (out_channels - 1,), dtype=jnp.float32)
    per_bias = jax.random.normal(k4, (out_channels - 1,), dtype=jnp.float32)

    # Example time input (B, T, 1).
    t = jax.random.normal(k5, (B, T, 1), dtype=jnp.float32)

    out = time2vec(t, lin_weight, lin_bias, per_weight, per_bias)
    out = jax.block_until_ready(out)

    ref = time2vec_ref(t, lin_weight, lin_bias, per_weight, per_bias)
    assert out.shape == (B, T, out_channels), out.shape
    assert jnp.allclose(out, ref, atol=1e-5, rtol=1e-5), "mismatch vs reference"

    print("KERNEL_OK")
</pallas_src>

<mosaic_0001>
module attributes {stable_mosaic.version = 11 : i64} {
  func.func @time2vec_kernel(%arg0: i32, %arg1: memref<1x384xf32, #tpu.memory_space<vmem>>, %arg2: memref<1x384xf32, #tpu.memory_space<vmem>>, %arg3: memref<8x128xf32, #tpu.memory_space<vmem>>, %arg4: memref<128x384xbf16, #tpu.memory_space<vmem>>, %arg5: memref<8x384xf32, #tpu.memory_space<vmem>>) attributes {dimension_semantics = [#tpu.dimension_semantics<parallel>], iteration_bounds = array<i64: 1>, scalar_prefetch = 0 : i64, scratch_operands = 0 : i64, tpu.core_type = #tpu.core_type<tc>, window_params = [{pipeline_mode = #tpu.pipeline_mode<synchronous>, transform_indices = @transform_0, window_bounds = array<i64: 1, 384>}, {pipeline_mode = #tpu.pipeline_mode<synchronous>, transform_indices = @transform_1, window_bounds = array<i64: 1, 384>}, {transform_indices = @transform_2, window_bounds = array<i64: 8, 128>}, {pipeline_mode = #tpu.pipeline_mode<synchronous>, transform_indices = @transform_3, window_bounds = array<i64: 128, 384>}, {transform_indices = @transform_4, window_bounds = array<i64: 8, 384>}]} {
    %c0 = arith.constant 0 : index
    %c0_0 = arith.constant 0 : index
    %0 = vector.load %arg3[%c0, %c0_0] : memref<8x128xf32, #tpu.memory_space<vmem>>, vector<8x128xf32>
    %c0_1 = arith.constant 0 : index
    %c0_2 = arith.constant 0 : index
    %1 = vector.load %arg4[%c0_1, %c0_2] : memref<128x384xbf16, #tpu.memory_space<vmem>>, vector<128x384xbf16>
    %2 = arith.truncf %0 : vector<8x128xf32> to vector<8x128xbf16>
    %cst = arith.constant dense<0.000000e+00> : vector<8x384xf32>
    %3 = tpu.matmul %2, %1, %cst {dimension_numbers = #tpu.dot_dimension_numbers<[1], [0], [0], [1], [0, 0, 1, 1], [], []>} : vector<8x128xbf16>, vector<128x384xbf16>, vector<8x384xf32> -> vector<8x384xf32>
    %4 = arith.extf %2 : vector<8x128xbf16> to vector<8x128xf32>
    %5 = arith.subf %0, %4 : vector<8x128xf32>
    %6 = arith.truncf %5 : vector<8x128xf32> to vector<8x128xbf16>
    %cst_3 = arith.constant dense<0.000000e+00> : vector<8x384xf32>
    %7 = tpu.matmul %6, %1, %cst_3 {dimension_numbers = #tpu.dot_dimension_numbers<[1], [0], [0], [1], [0, 0, 1, 1], [], []>} : vector<8x128xbf16>, vector<128x384xbf16>, vector<8x384xf32> -> vector<8x384xf32>
    %8 = arith.addf %3, %7 : vector<8x384xf32>
    %9 = arith.extf %6 : vector<8x128xbf16> to vector<8x128xf32>
    %10 = arith.subf %5, %9 : vector<8x128xf32>
    %11 = arith.truncf %10 : vector<8x128xf32> to vector<8x128xbf16>
    %cst_4 = arith.constant dense<0.000000e+00> : vector<8x384xf32>
    %12 = tpu.matmul %11, %1, %cst_4 {dimension_numbers = #tpu.dot_dimension_numbers<[1], [0], [0], [1], [0, 0, 1, 1], [], []>} : vector<8x128xbf16>, vector<128x384xbf16>, vector<8x384xf32> -> vector<8x384xf32>
    %13 = arith.addf %8, %12 : vector<8x384xf32>
    %c0_5 = arith.constant 0 : index
    %c0_6 = arith.constant 0 : index
    %14 = vector.load %arg1[%c0_5, %c0_6] : memref<1x384xf32, #tpu.memory_space<vmem>>, vector<1x384xf32>
    %15 = vector.broadcast %14 : vector<1x384xf32> to vector<8x384xf32>
    %16 = arith.mulf %15, %13 : vector<8x384xf32>
    %c0_7 = arith.constant 0 : index
    %c0_8 = arith.constant 0 : index
    %17 = vector.load %arg2[%c0_7, %c0_8] : memref<1x384xf32, #tpu.memory_space<vmem>>, vector<1x384xf32>
    %18 = vector.broadcast %17 : vector<1x384xf32> to vector<8x384xf32>
    %19 = arith.addf %16, %18 : vector<8x384xf32>
    %20 = tpu.iota {dimensions = array<i32: 1>} : vector<8x384xi32>
    %c3_i32 = arith.constant 3 : i32
    %c0_i32 = arith.constant 0 : i32
    %21 = arith.cmpi eq, %c3_i32, %c0_i32 : i32
    %c1_i32 = arith.constant 1 : i32
    %22 = arith.select %21, %c1_i32, %c3_i32 : i32
    %23 = vector.broadcast %22 : i32 to vector<8x384xi32>
    %24 = arith.remsi %20, %23 : vector<8x384xi32>
    %c0_i32_9 = arith.constant 0 : i32
    %25 = vector.broadcast %c0_i32_9 : i32 to vector<8x384xi32>
    %26 = arith.cmpi ne, %24, %25 : vector<8x384xi32>
    %c0_i32_10 = arith.constant 0 : i32
    %27 = vector.broadcast %c0_i32_10 : i32 to vector<8x384xi32>
    %28 = arith.cmpi slt, %24, %27 : vector<8x384xi32>
    %c0_i32_11 = arith.constant 0 : i32
    %29 = arith.cmpi slt, %22, %c0_i32_11 : i32
    %30 = vector.broadcast %29 : i1 to vector<8x384xi1>
    %31 = vector.broadcast %30 : vector<8x384xi1> to vector<8x384xi1>
    %32 = arith.xori %28, %31 : vector<8x384xi1>
    %33 = arith.andi %32, %26 : vector<8x384xi1>
    %34 = vector.broadcast %22 : i32 to vector<8x384xi32>
    %35 = arith.addi %24, %34 : vector<8x384xi32>
    %36 = arith.select %33, %35, %24 : vector<8x384xi1>, vector<8x384xi32>
    %c0_i32_12 = arith.constant 0 : i32
    %37 = vector.broadcast %c0_i32_12 : i32 to vector<8x384xi32>
    %38 = arith.cmpi eq, %36, %37 : vector<8x384xi32>
    %39 = math.sin %19 : vector<8x384xf32>
    %40 = arith.select %38, %19, %39 : vector<8x384xi1>, vector<8x384xf32>
    %c0_13 = arith.constant 0 : index
    %c0_14 = arith.constant 0 : index
    %41 = vector.load %arg5[%c0_13, %c0_14] : memref<8x384xf32, #tpu.memory_space<vmem>>, vector<8x384xf32>
    tpu.vector_store %arg5[%c0_13, %c0_14], %40 {strides = array<i32>} : memref<8x384xf32, #tpu.memory_space<vmem>>, vector<8x384xf32>,
    return
  }
  func.func @transform_0(%arg0: i32) -> (i32, i32) {
    %c0_i32 = arith.constant 0 : i32
    %c0_i32_0 = arith.constant 0 : i32
    %c0_i32_1 = arith.constant 0 : i32
    return %c0_i32, %c0_i32_0 : i32, i32
  }
  func.func @transform_1(%arg0: i32) -> (i32, i32) {
    %c0_i32 = arith.constant 0 : i32
    %c0_i32_0 = arith.constant 0 : i32
    %c0_i32_1 = arith.constant 0 : i32
    return %c0_i32, %c0_i32_0 : i32, i32
  }
  func.func @transform_2(%arg0: i32) -> (i32, i32) {
    %c0_i32 = arith.constant 0 : i32
    %c0_i32_0 = arith.constant 0 : i32
    return %arg0, %c0_i32 : i32, i32
  }
  func.func @transform_3(%arg0: i32) -> (i32, i32) {
    %c0_i32 = arith.constant 0 : i32
    %c0_i32_0 = arith.constant 0 : i32
    %c0_i32_1 = arith.constant 0 : i32
    return %c0_i32, %c0_i32_0 : i32, i32
  }
  func.func @transform_4(%arg0: i32) -> (i32, i32) {
    %c0_i32 = arith.constant 0 : i32
    %c0_i32_0 = arith.constant 0 : i32
    return %arg0, %c0_i32 : i32, i32
  }
}

</mosaic_0001>

<llo_original>
// kernel: tpu_custom_call.1
$region0: #{tpu_custom_call.1}
  #allocation0 [shape = 'u32[]', space=smem, size = 0x4, offset = 0x4, fixed_abs, tag = 'smem constant byte address 0x4 - core index']
  #allocation1 [shape = 'u32[144,128]{1,0:T(1,128)}', space=vmem, size = 0x12000, scoped, tag = 'internal scratch']
  %s0 = inlined_call_operand.hbm [shape: f32[1,384], index: 0, kind: input, shape index: {}]
  %s1 = inlined_call_operand.hbm [shape: f32[1,384], index: 1, kind: input, shape index: {}]
  %s2 = inlined_call_operand.hbm [shape: f32[8,128], index: 2, kind: input, shape index: {}]
  %s3 = inlined_call_operand.hbm [shape: bf16[128,384], index: 3, kind: input, shape index: {}]
  %s4 = inlined_call_operand.hbm [shape: f32[8,384], index: 4, kind: output, shape index: {}]
  %s5 = sld [smem:[#allocation0]]
  $region42: #{tpu_custom_call.1} parent=0
    _
  %s7 = ssub.s32 1, %s5
  %s8 = scalar_select 0, %s7, %s5
  $region1: #{tpu_custom_call.1} parent=0
    #allocation2 [shape = 'u8[1536]{0}', space=vmem, size = 0x800, scoped, tag = 'input window, operand 0, single buffered']
    #allocation3 [shape = 's32[1]{0}', space=sflag, size = 0x4, scoped, tag = 'scoped memory for tpu_custom_call.1']
    #allocation4 [shape = 's32[1]{0}', space=sflag, size = 0x4, scoped, tag = 'scoped memory for tpu_custom_call.1']
    #allocation5 [shape = 'u8[1536]{0}', space=vmem, size = 0x800, scoped, tag = 'input window, operand 1, single buffered']
    #allocation6 [shape = 's32[1]{0}', space=sflag, size = 0x4, scoped, tag = 'scoped memory for tpu_custom_call.1']
    #allocation7 [shape = 'u8[4096]{0}', space=vmem, size = 0x1000, scoped, tag = 'input window, operand 2, single buffered']
    #allocation8 [shape = 'u8[98304]{0}', space=vmem, size = 0x18000, scoped, tag = 'input window, operand 3, single buffered']
    #allocation9 [shape = 's32[1]{0}', space=sflag, size = 0x4, scoped, tag = 'scoped memory for tpu_custom_call.1']
    #allocation10 [shape = 'u8[12288]{0}', space=vmem, size = 0x3000, scoped, tag = 'output window, operand 0, single buffered']
    %9 = vsyncpa [#allocation3], 0
    %10 = vsyncpa [#allocation6], 0
    %11 = vsyncpa [#allocation9], 0
    %12 = vsyncpa [#allocation4], 0
    // Predicated region
    $region2: #{tpu_custom_call.1} parent=1 // pred_check
      _
    $region3: #{tpu_custom_call.1} parent=1 // pred_check_branch
      %14 = sbr.rel (0) target = $region5
    $region4: #{tpu_custom_call.1} parent=1 // pred_region
      %s16 = ssub.s32 48, 48
      %17 = vsyncadd [#allocation3], %s16
      %s19 = sshll.u32 [#allocation2], 4
      %s20 = int_to_ptr.vmem [resolvable:$true] %s19
      %22 = dma.hbm_to_vmem [thread:$0]  %s0, 48, %s20, [#allocation3]
    $region5: #{tpu_custom_call.1} parent=1 // pred_fallthru
      _
    // Predicated region
    $region6: #{tpu_custom_call.1} parent=1 // pred_check
      _
    $region7: #{tpu_custom_call.1} parent=1 // pred_check_branch
      %24 = sbr.rel (0) target = $region9
    $region8: #{tpu_custom_call.1} parent=1 // pred_region
      %s26 = ssub.s32 48, 48
      %27 = vsyncadd [#allocation6], %s26
      %s29 = sshll.u32 [#allocation5], 4
      %s30 = int_to_ptr.vmem [resolvable:$true] %s29
      %32 = dma.hbm_to_vmem [thread:$0]  %s1, 48, %s30, [#allocation6]
    $region9: #{tpu_custom_call.1} parent=1 // pred_fallthru
      _
    // Predicated region
    $region10: #{tpu_custom_call.1} parent=1 // pred_check
      _
    $region11: #{tpu_custom_call.1} parent=1 // pred_check_branch
      %34 = sbr.rel (0) target = $region13
    $region12: #{tpu_custom_call.1} parent=1 // pred_region
      %s36 = ssub.s32 128, 128
      %37 = vsyncadd [#allocation6], %s36
      %s39 = sshll.u32 [#allocation7], 4
      %s40 = int_to_ptr.vmem [resolvable:$true] %s39
      %42 = dma.hbm_to_vmem [thread:$0]  %s2, 128, %s40, [#allocation6]
    $region13: #{tpu_custom_call.1} parent=1 // pred_fallthru
      _
    // Predicated region
    $region14: #{tpu_custom_call.1} parent=1 // pred_check
      _
    $region15: #{tpu_custom_call.1} parent=1 // pred_check_branch
      %44 = sbr.rel (0) target = $region17
    $region16: #{tpu_custom_call.1} parent=1 // pred_region
      %s46 = ssub.s32 3072, 3072
      %47 = vsyncadd [#allocation9], %s46
      %s48 = sshll.u32 [#allocation8], 4
      %s49 = int_to_ptr.vmem [resolvable:$true] %s48
      %54 = dma.hbm_to_vmem [thread:$0]  %s3, 3072, %s49, [#allocation9], 192, 192, 12
    $region17: #{tpu_custom_call.1} parent=1 // pred_fallthru
      _
    // Predicated region
    $region18: #{tpu_custom_call.1} parent=1 // pred_check
      _
    $region19: #{tpu_custom_call.1} parent=1 // pred_check_branch
      %56 = sbr.rel (0) target = $region21
    $region20: #{tpu_custom_call.1} parent=1 // pred_region
      %57 = dma.done [#allocation3], 48
    $region21: #{tpu_custom_call.1} parent=1 // pred_fallthru
      _
    // Predicated region
    $region22: #{tpu_custom_call.1} parent=1 // pred_check
      _
    $region23: #{tpu_custom_call.1} parent=1 // pred_check_branch
      %59 = sbr.rel (0) target = $region25
    $region24: #{tpu_custom_call.1} parent=1 // pred_region
      %60 = dma.done [#allocation6], 48
    $region25: #{tpu_custom_call.1} parent=1 // pred_fallthru
      _
    // Predicated region
    $region26: #{tpu_custom_call.1} parent=1 // pred_check
      _
    $region27: #{tpu_custom_call.1} parent=1 // pred_check_branch
      %62 = sbr.rel (0) target = $region29
    $region28: #{tpu_custom_call.1} parent=1 // pred_region
      %63 = dma.done [#allocation6], 128
    $region29: #{tpu_custom_call.1} parent=1 // pred_fallthru
      _
    // Predicated region
    $region30: #{tpu_custom_call.1} parent=1 // pred_check
      _
    $region31: #{tpu_custom_call.1} parent=1 // pred_check_branch
      %65 = sbr.rel (0) target = $region33
    $region32: #{tpu_custom_call.1} parent=1 // pred_region
      %66 = dma.done [#allocation9], 3072
    $region33: #{tpu_custom_call.1} parent=1 // pred_fallthru
      _
    %v68 = vld [vmem:[#allocation7] sm:$0xff]
    %v69 = vld [vmem:[#allocation8] sm:$0xff]
    %v70 = vld [vmem:[#allocation8 + $0x8] sm:$0xf]
    %v71 = vld [vmem:[#allocation8 + $0xc] sm:$0xff]
    %v72 = vld [vmem:[#allocation8 + $0x14] sm:$0xf]
    %v73 = vld [vmem:[#allocation8 + $0x18] sm:$0xff]
    %v74 = vld [vmem:[#allocation8 + $0x20] sm:$0xf]
    %v75 = vld [vmem:[#allocation8 + $0x24] sm:$0xff]
    %v76 = vld [vmem:[#allocation8 + $0x2c] sm:$0xf]
    %v77 = vld [vmem:[#allocation8 + $0x30] sm:$0xff]
    %v78 = vld [vmem:[#allocation8 + $0x38] sm:$0xf]
    %v79 = vld [vmem:[#allocation8 + $0x3c] sm:$0xff]
    %v80 = vld [vmem:[#allocation8 + $0x44] sm:$0xf]
    %v81 = vld [vmem:[#allocation8 + $0x48] sm:$0xff]
    %v82 = vld [vmem:[#allocation8 + $0x50] sm:$0xf]
    %v83 = vld [vmem:[#allocation8 + $0x54] sm:$0xff]
    %v84 = vld [vmem:[#allocation8 + $0x5c] sm:$0xf]
    %v85 = vld [vmem:[#allocation8 + $0x60] sm:$0xff]
    %v86 = vld [vmem:[#allocation8 + $0x68] sm:$0xf]
    %v87 = vld [vmem:[#allocation8 + $0x6c] sm:$0xff]
    %v88 = vld [vmem:[#allocation8 + $0x74] sm:$0xf]
    %v89 = vld [vmem:[#allocation8 + $0x78] sm:$0xff]
    %v90 = vld [vmem:[#allocation8 + $0x80] sm:$0xf]
    %v91 = vld [vmem:[#allocation8 + $0x84] sm:$0xff]
    %v92 = vld [vmem:[#allocation8 + $0x8c] sm:$0xf]
    %v93 = vld [vmem:[#allocation8 + $0x90] sm:$0xff]
    %v94 = vld [vmem:[#allocation8 + $0x98] sm:$0xf]
    %v95 = vld [vmem:[#allocation8 + $0x9c] sm:$0xff]
    %v96 = vld [vmem:[#allocation8 + $0xa4] sm:$0xf]
    %v97 = vld [vmem:[#allocation8 + $0xa8] sm:$0xff]
    %v98 = vld [vmem:[#allocation8 + $0xb0] sm:$0xf]
    %v99 = vld [vmem:[#allocation8 + $0xb4] sm:$0xff]
    %v100 = vld [vmem:[#allocation8 + $0xbc] sm:$0xf]
    %v101 = vpack.c.bf16 %v68, %v68
    %v102 = vunpack.c.l.bf16 %v101
    %v103 = vsub.f32 %v68, %v102
    %v104 = vpack.c.bf16 %v103, %v103
    %v137 = vunpack.c.l.b16 %v69
    %v138 = vunpack.c.h.b16 %v69
    %v139 = vunpack.c.l.b16 %v70
    %v140 = vunpack.c.l.b16 %v71
    %v141 = vunpack.c.h.b16 %v71
    %v142 = vunpack.c.l.b16 %v72
    %v143 = vunpack.c.l.b16 %v73
    %v144 = vunpack.c.h.b16 %v73
    %v145 = vunpack.c.l.b16 %v74
    %v146 = vunpack.c.l.b16 %v75
    %v147 = vunpack.c.h.b16 %v75
    %v148 = vunpack.c.l.b16 %v76
    %v149 = vunpack.c.l.b16 %v77
    %v150 = vunpack.c.h.b16 %v77
    %v151 = vunpack.c.l.b16 %v78
    %v152 = vunpack.c.l.b16 %v79
    %v153 = vunpack.c.h.b16 %v79
    %v154 = vunpack.c.l.b16 %v80
    %v155 = vunpack.c.l.b16 %v81
    %v156 = vunpack.c.h.b16 %v81
    %v157 = vunpack.c.l.b16 %v82
    %v158 = vunpack.c.l.b16 %v83
    %v159 = vunpack.c.h.b16 %v83
    %v160 = vunpack.c.l.b16 %v84
    %v161 = vunpack.c.l.b16 %v85
    %v162 = vunpack.c.h.b16 %v85
    %v163 = vunpack.c.l.b16 %v86
    %v164 = vunpack.c.l.b16 %v87
    %v165 = vunpack.c.h.b16 %v87
    %v166 = vunpack.c.l.b16 %v88
    %v167 = vunpack.c.l.b16 %v89
    %v168 = vunpack.c.h.b16 %v89
    %v169 = vunpack.c.l.b16 %v90
    %v170 = vunpack.c.l.b16 %v91
    %v171 = vunpack.c.h.b16 %v91
    %v172 = vunpack.c.l.b16 %v92
    %v173 = vunpack.c.l.b16 %v93
    %v174 = vunpack.c.h.b16 %v93
    %v175 = vunpack.c.l.b16 %v94
    %v176 = vunpack.c.l.b16 %v95
    %v177 = vunpack.c.h.b16 %v95
    %v178 = vunpack.c.l.b16 %v96
    %v179 = vunpack.c.l.b16 %v97
    %v180 = vunpack.c.h.b16 %v97
    %v181 = vunpack.c.l.b16 %v98
    %v182 = vunpack.c.l.b16 %v99
    %v183 = vunpack.c.h.b16 %v99
    %v184 = vunpack.c.l.b16 %v100
    %v185 = vpack.c.b16 %v140, %v137
    %v186 = vpack.c.b16 %v141, %v138
    %v187 = vpack.c.b16 %v142, %v139
    %v188 = vpack.c.b16 %v146, %v143
    %v189 = vpack.c.b16 %v147, %v144
    %v190 = vpack.c.b16 %v148, %v145
    %v191 = vpack.c.b16 %v152, %v149
    %v192 = vpack.c.b16 %v153, %v150
    %v193 = vpack.c.b16 %v154, %v151
    %v194 = vpack.c.b16 %v158, %v155
    %v195 = vpack.c.b16 %v159, %v156
    %v196 = vpack.c.b16 %v160, %v157
    %v197 = vpack.c.b16 %v164, %v161
    %v198 = vpack.c.b16 %v165, %v162
    %v199 = vpack.c.b16 %v166, %v163
    %v200 = vpack.c.b16 %v170, %v167
    %v201 = vpack.c.b16 %v171, %v168
    %v202 = vpack.c.b16 %v172, %v169
    %v203 = vpack.c.b16 %v176, %v173
    %v204 = vpack.c.b16 %v177, %v174
    %v205 = vpack.c.b16 %v178, %v175
    %v206 = vpack.c.b16 %v182, %v179
    %v207 = vpack.c.b16 %v183, %v180
    %v208 = vpack.c.b16 %v184, %v181
    %233 = vmatprep.subr.bf16.mxu0 %v207
    %234 = vmatpush1.bf16.msra.mxu0 %v206
    %235 = vmatprep.subr.bf16.mxu0 %v204
    %236 = vmatpush1.bf16.msra.mxu0 %v203
    %237 = vmatprep.subr.bf16.mxu0 %v201
    %238 = vmatpush1.bf16.msra.mxu0 %v200
    %239 = vmatprep.subr.bf16.mxu0 %v198
    %240 = vmatpush1.bf16.msra.mxu0 %v197
    %241 = vmatprep.subr.bf16.mxu0 %v195
    %242 = vmatpush1.bf16.msra.mxu0 %v194
    %243 = vmatprep.subr.bf16.mxu0 %v192
    %244 = vmatpush1.bf16.msra.mxu0 %v191
    %245 = vmatprep.subr.bf16.mxu0 %v189
    %246 = vmatpush1.bf16.msra.mxu0 %v188
    %247 = vmatprep.subr.bf16.mxu0 %v186
    %248 = vmatpush1.bf16.msra.mxu0 %v185
    %249 = vmatprep.subr.bf16.mxu0 0
    %250 = vmatpush2.bf16.msra.mxu0 0
    %251 = vmatprep.subr.bf16.mxu0 0
    %252 = vmatpush2.bf16.msra.mxu0 0
    %253 = vmatprep.subr.bf16.mxu0 0
    %254 = vmatpush2.bf16.msra.mxu0 0
    %255 = vmatprep.subr.bf16.mxu0 0
    %256 = vmatpush2.bf16.msra.mxu0 0
    %257 = vmatprep.subr.bf16.mxu0 0
    %258 = vmatpush2.bf16.msra.mxu0 0
    %259 = vmatprep.subr.bf16.mxu0 0
    %260 = vmatpush2.bf16.msra.mxu0 0
    %261 = vmatprep.subr.bf16.mxu0 0
    %262 = vmatpush2.bf16.msra.mxu0 0
    %263 = vmatprep.subr.bf16.mxu0 0
    %264 = vmatpush2.bf16.msra.mxu0 0
    %265 = vmatprep.mubr.bf16.mxu0 0
    %266 = vmatmul.mubr.bf16.gmra.mxu0 %v104
    %v267 = vpop.f32.mrf.mxu0
    %v268 = vadd.f32 0.0, %v267
    %v269 = vpop.f32.mrf.mxu0
    %v270 = vadd.f32 0.0, %v269
    %v271 = vpop.f32.mrf.mxu0
    %v272 = vpop.f32.mrf.mxu0
    %273 = vdwg.mxu0
    %274 = vmatprep.subr.bf16.mxu0 0
    %275 = vmatpush1.bf16.msra.mxu0 %v208
    %276 = vmatprep.subr.bf16.mxu0 0
    %277 = vmatpush1.bf16.msra.mxu0 %v205
    %278 = vmatprep.subr.bf16.mxu0 0
    %279 = vmatpush1.bf16.msra.mxu0 %v202
    %280 = vmatprep.subr.bf16.mxu0 0
    %281 = vmatpush1.bf16.msra.mxu0 %v199
    %282 = vmatprep.subr.bf16.mxu0 0
    %283 = vmatpush1.bf16.msra.mxu0 %v196
    %284 = vmatprep.subr.bf16.mxu0 0
    %285 = vmatpush1.bf16.msra.mxu0 %v193
    %286 = vmatprep.subr.bf16.mxu0 0
    %287 = vmatpush1.bf16.msra.mxu0 %v190
    %288 = vmatprep.subr.bf16.mxu0 0
    %289 = vmatpush1.bf16.msra.mxu0 %v187
    %290 = vmatprep.subr.bf16.mxu0 0
    %291 = vmatpush2.bf16.msra.mxu0 0
    %292 = vmatprep.subr.bf16.mxu0 0
    %293 = vmatpush2.bf16.msra.mxu0 0
    %294 = vmatprep.subr.bf16.mxu0 0
    %295 = vmatpush2.bf16.msra.mxu0 0
    %296 = vmatprep.subr.bf16.mxu0 0
    %297 = vmatpush2.bf16.msra.mxu0 0
    %298 = vmatprep.subr.bf16.mxu0 0
    %299 = vmatpush2.bf16.msra.mxu0 0
    %300 = vmatprep.subr.bf16.mxu0 0
    %301 = vmatpush2.bf16.msra.mxu0 0
    %302 = vmatprep.subr.bf16.mxu0 0
    %303 = vmatpush2.bf16.msra.mxu0 0
    %304 = vmatprep.subr.bf16.mxu0 0
    %305 = vmatpush2.bf16.msra.mxu0 0
    %306 = vmatprep.mubr.bf16.mxu0 0
    %307 = vmatmul.mubr.bf16.gmra.mxu0 %v104
    %v308 = vpop.f32.mrf.mxu0
    %v309 = vadd.f32 0.0, %v308
    %v310 = vpop.f32.mrf.mxu0
    %v311 = vpop.f32.mrf.mxu0
    %v312 = vpop.f32.mrf.mxu0
    %313 = vdwg.mxu0
    %314 = vmatprep.subr.bf16.mxu0 %v207
    %315 = vmatpush1.bf16.msra.mxu0 %v206
    %316 = vmatprep.subr.bf16.mxu0 %v204
    %317 = vmatpush1.bf16.msra.mxu0 %v203
    %318 = vmatprep.subr.bf16.mxu0 %v201
    %319 = vmatpush1.bf16.msra.mxu0 %v200
    %320 = vmatprep.subr.bf16.mxu0 %v198
    %321 = vmatpush1.bf16.msra.mxu0 %v197
    %322 = vmatprep.subr.bf16.mxu0 %v195
    %323 = vmatpush1.bf16.msra.mxu0 %v194
    %324 = vmatprep.subr.bf16.mxu0 %v192
    %325 = vmatpush1.bf16.msra.mxu0 %v191
    %326 = vmatprep.subr.bf16.mxu0 %v189
    %327 = vmatpush1.bf16.msra.mxu0 %v188
    %328 = vmatprep.subr.bf16.mxu0 %v186
    %329 = vmatpush1.bf16.msra.mxu0 %v185
    %330 = vmatprep.subr.bf16.mxu0 0
    %331 = vmatpush2.bf16.msra.mxu0 0
    %332 = vmatprep.subr.bf16.mxu0 0
    %333 = vmatpush2.bf16.msra.mxu0 0
    %334 = vmatprep.subr.bf16.mxu0 0
    %335 = vmatpush2.bf16.msra.mxu0 0
    %336 = vmatprep.subr.bf16.mxu0 0
    %337 = vmatpush2.bf16.msra.mxu0 0
    %338 = vmatprep.subr.bf16.mxu0 0
    %339 = vmatpush2.bf16.msra.mxu0 0
    %340 = vmatprep.subr.bf16.mxu0 0
    %341 = vmatpush2.bf16.msra.mxu0 0
    %342 = vmatprep.subr.bf16.mxu0 0
    %343 = vmatpush2.bf16.msra.mxu0 0
    %344 = vmatprep.subr.bf16.mxu0 0
    %345 = vmatpush2.bf16.msra.mxu0 0
    %346 = vmatprep.mubr.bf16.mxu0 0
    %347 = vmatmul.mubr.bf16.gmra.mxu0 %v101
    %v348 = vpop.f32.mrf.mxu0
    %v349 = vadd.f32 %v268, %v348
    %v350 = vpop.f32.mrf.mxu0
    %v351 = vadd.f32 %v270, %v350
    %v352 = vpop.f32.mrf.mxu0
    %v353 = vpop.f32.mrf.mxu0
    %354 = vdwg.mxu0
    %355 = vmatprep.subr.bf16.mxu0 0
    %356 = vmatpush1.bf16.msra.mxu0 %v208
    %357 = vmatprep.subr.bf16.mxu0 0
    %358 = vmatpush1.bf16.msra.mxu0 %v205
    %359 = vmatprep.subr.bf16.mxu0 0
    %360 = vmatpush1.bf16.msra.mxu0 %v202
    %361 = vmatprep.subr.bf16.mxu0 0
    %362 = vmatpush1.bf16.msra.mxu0 %v199
    %363 = vmatprep.subr.bf16.mxu0 0
    %364 = vmatpush1.bf16.msra.mxu0 %v196
    %365 = vmatprep.subr.bf16.mxu0 0
    %366 = vmatpush1.bf16.msra.mxu0 %v193
    %367 = vmatprep.subr.bf16.mxu0 0
    %368 = vmatpush1.bf16.msra.mxu0 %v190
    %369 = vmatprep.subr.bf16.mxu0 0
    %370 = vmatpush1.bf16.msra.mxu0 %v187
    %371 = vmatprep.subr.bf16.mxu0 0
    %372 = vmatpush2.bf16.msra.mxu0 0
    %373 = vmatprep.subr.bf16.mxu0 0
    %374 = vmatpush2.bf16.msra.mxu0 0
    %375 = vmatprep.subr.bf16.mxu0 0
    %376 = vmatpush2.bf16.msra.mxu0 0
    %377 = vmatprep.subr.bf16.mxu0 0
    %378 = vmatpush2.bf16.msra.mxu0 0
    %379 = vmatprep.subr.bf16.mxu0 0
    %380 = vmatpush2.bf16.msra.mxu0 0
    %381 = vmatprep.subr.bf16.mxu0 0
    %382 = vmatpush2.bf16.msra.mxu0 0
    %383 = vmatprep.subr.bf16.mxu0 0
    %384 = vmatpush2.bf16.msra.mxu0 0
    %385 = vmatprep.subr.bf16.mxu0 0
    %386 = vmatpush2.bf16.msra.mxu0 0
    %387 = vmatprep.mubr.bf16.mxu0 0
    %388 = vmatmul.mubr.bf16.gmra.mxu0 %v101
    %v389 = vpop.f32.mrf.mxu0
    %v390 = vadd.f32 %v309, %v389
    %v391 = vpop.f32.mrf.mxu0
    %v392 = vpop.f32.mrf.mxu0
    %v393 = vpop.f32.mrf.mxu0
    %394 = vdwg.mxu0
    %v395 = vunpack.c.l.bf16 %v104
    %v396 = vsub.f32 %v103, %v395
    %v397 = vpack.c.bf16 %v396, %v396
    %398 = vmatprep.subr.bf16.mxu0 %v207
    %399 = vmatpush1.bf16.msra.mxu0 %v206
    %400 = vmatprep.subr.bf16.mxu0 %v204
    %401 = vmatpush1.bf16.msra.mxu0 %v203
    %402 = vmatprep.subr.bf16.mxu0 %v201
    %403 = vmatpush1.bf16.msra.mxu0 %v200
    %404 = vmatprep.subr.bf16.mxu0 %v198
    %405 = vmatpush1.bf16.msra.mxu0 %v197
    %406 = vmatprep.subr.bf16.mxu0 %v195
    %407 = vmatpush1.bf16.msra.mxu0 %v194
    %408 = vmatprep.subr.bf16.mxu0 %v192
    %409 = vmatpush1.bf16.msra.mxu0 %v191
    %410 = vmatprep.subr.bf16.mxu0 %v189
    %411 = vmatpush1.bf16.msra.mxu0 %v188
    %412 = vmatprep.subr.bf16.mxu0 %v186
    %413 = vmatpush1.bf16.msra.mxu0 %v185
    %414 = vmatprep.subr.bf16.mxu0 0
    %415 = vmatpush2.bf16.msra.mxu0 0
    %416 = vmatprep.subr.bf16.mxu0 0
    %417 = vmatpush2.bf16.msra.mxu0 0
    %418 = vmatprep.subr.bf16.mxu0 0
    %419 = vmatpush2.bf16.msra.mxu0 0
    %420 = vmatprep.subr.bf16.mxu0 0
    %421 = vmatpush2.bf16.msra.mxu0 0
    %422 = vmatprep.subr.bf16.mxu0 0
    %423 = vmatpush2.bf16.msra.mxu0 0
    %424 = vmatprep.subr.bf16.mxu0 0
    %425 = vmatpush2.bf16.msra.mxu0 0
    %426 = vmatprep.subr.bf16.mxu0 0
    %427 = vmatpush2.bf16.msra.mxu0 0
    %428 = vmatprep.subr.bf16.mxu0 0
    %429 = vmatpush2.bf16.msra.mxu0 0
    %430 = vmatprep.mubr.bf16.mxu0 0
    %431 = vmatmul.mubr.bf16.gmra.mxu0 %v397
    %v432 = vpop.f32.mrf.mxu0
    %v433 = vadd.f32 0.0, %v432
    %v434 = vpop.f32.mrf.mxu0
    %v435 = vadd.f32 0.0, %v434
    %v436 = vpop.f32.mrf.mxu0
    %v437 = vpop.f32.mrf.mxu0
    %438 = vdwg.mxu0
    %439 = vmatprep.subr.bf16.mxu0 0
    %440 = vmatpush1.bf16.msra.mxu0 %v208
    %441 = vmatprep.subr.bf16.mxu0 0
    %442 = vmatpush1.bf16.msra.mxu0 %v205
    %443 = vmatprep.subr.bf16.mxu0 0
    %444 = vmatpush1.bf16.msra.mxu0 %v202
    %445 = vmatprep.subr.bf16.mxu0 0
    %446 = vmatpush1.bf16.msra.mxu0 %v199
    %447 = vmatprep.subr.bf16.mxu0 0
    %448 = vmatpush1.bf16.msra.mxu0 %v196
    %449 = vmatprep.subr.bf16.mxu0 0
    %450 = vmatpush1.bf16.msra.mxu0 %v193
    %451 = vmatprep.subr.bf16.mxu0 0
    %452 = vmatpush1.bf16.msra.mxu0 %v190
    %453 = vmatprep.subr.bf16.mxu0 0
    %454 = vmatpush1.bf16.msra.mxu0 %v187
    %455 = vmatprep.subr.bf16.mxu0 0
    %456 = vmatpush2.bf16.msra.mxu0 0
    %457 = vmatprep.subr.bf16.mxu0 0
    %458 = vmatpush2.bf16.msra.mxu0 0
    %459 = vmatprep.subr.bf16.mxu0 0
    %460 = vmatpush2.bf16.msra.mxu0 0
    %461 = vmatprep.subr.bf16.mxu0 0
    %462 = vmatpush2.bf16.msra.mxu0 0
    %463 = vmatprep.subr.bf16.mxu0 0
    %464 = vmatpush2.bf16.msra.mxu0 0
    %465 = vmatprep.subr.bf16.mxu0 0
    %466 = vmatpush2.bf16.msra.mxu0 0
    %467 = vmatprep.subr.bf16.mxu0 0
    %468 = vmatpush2.bf16.msra.mxu0 0
    %469 = vmatprep.subr.bf16.mxu0 0
    %470 = vmatpush2.bf16.msra.mxu0 0
    %471 = vmatprep.mubr.bf16.mxu0 0
    %472 = vmatmul.mubr.bf16.gmra.mxu0 %v397
    %v473 = vpop.f32.mrf.mxu0
    %v474 = vadd.f32 0.0, %v473
    %v475 = vpop.f32.mrf.mxu0
    %v476 = vpop.f32.mrf.mxu0
    %v477 = vpop.f32.mrf.mxu0
    %478 = vdwg.mxu0
    %v479 = vadd.f32 %v349, %v433
    %v480 = vadd.f32 %v351, %v435
    %v481 = vadd.f32 %v390, %v474
    %v482 = vld [vmem:[#allocation2] sm:$0x7]
    %v484 = vlaneseq
    %v485 = vshrl.u32 %v484, 7
    %v486 = vsub.s32 0, %v485
    %v487 = vrot.slane %v482, %v486
    %v488 = vlaneseq
    %v489 = vshrl.u32 %v488, 7
    %v490 = vsub.s32 1, %v489
    %v491 = vrot.slane %v482, %v490
    %v492 = vlaneseq
    %v493 = vshrl.u32 %v492, 7
    %v494 = vsub.s32 2, %v493
    %v495 = vrot.slane %v482, %v494
    %v499 = vmul.f32 %v487, %v479
    %v500 = vmul.f32 %v491, %v480
    %v501 = vmul.f32 %v495, %v481
    %v502 = vld [vmem:[#allocation5] sm:$0x7]
    %v504 = vlaneseq
    %v505 = vshrl.u32 %v504, 7
    %v506 = vsub.s32 0, %v505
    %v507 = vrot.slane %v502, %v506
    %v508 = vlaneseq
    %v509 = vshrl.u32 %v508, 7
    %v510 = vsub.s32 1, %v509
    %v511 = vrot.slane %v502, %v510
    %v512 = vlaneseq
    %v513 = vshrl.u32 %v512, 7
    %v514 = vsub.s32 2, %v513
    %v515 = vrot.slane %v502, %v514
    %v519 = vadd.f32 %v499, %v507
    %v520 = vadd.f32 %v500, %v511
    %v521 = vadd.f32 %v501, %v515
    %v522 = vlaneseq
    %v523 = vand.u32 %v522, 127
    %v524 = vadd.s32 %v523, 128
    %v525 = vadd.s32 %v523, 256
    %vm526 = vcmp.lt.s32.totalorder %v523, 0
    %v527 = vsub.s32 0, %v523
    %v528 = vsel %vm526, %v527, %v523
    %v529 = vmul.u32.u64.compose %v528, 2863311531
    %v530 = vextract.low.u32 %v529
    %v531 = vextract.high.u32 %v529
    %v532 = vshrl.u32 %v531, 1
    %v533 = vmul.u32 %v532, 3
    %v534 = vsub.s32 %v528, %v533
    %v535 = vsub.s32 0, %v534
    %v536 = vsel %vm526, %v535, %v534
    %vm537 = vcmp.lt.s32.totalorder %v524, 0
    %v538 = vsub.s32 0, %v524
    %v539 = vsel %vm537, %v538, %v524
    %v540 = vmul.u32.u64.compose %v539, 2863311531
    %v541 = vextract.low.u32 %v540
    %v542 = vextract.high.u32 %v540
    %v543 = vshrl.u32 %v542, 1
    %v544 = vmul.u32 %v543, 3
    %v545 = vsub.s32 %v539, %v544
    %v546 = vsub.s32 0, %v545
    %v547 = vsel %vm537, %v546, %v545
    %vm548 = vcmp.lt.s32.totalorder %v525, 0
    %v549 = vsub.s32 0, %v525
    %v550 = vsel %vm548, %v549, %v525
    %v551 = vmul.u32.u64.compose %v550, 2863311531
    %v552 = vextract.low.u32 %v551
    %v553 = vextract.high.u32 %v551
    %v554 = vshrl.u32 %v553, 1
    %v555 = vmul.u32 %v554, 3
    %v556 = vsub.s32 %v550, %v555
    %v557 = vsub.s32 0, %v556
    %v558 = vsel %vm548, %v557, %v556
    %vm559 = vcmp.ne.s32.totalorder %v536, 0
    %vm560 = vcmp.ne.s32.totalorder %v547, 0
    %vm561 = vcmp.ne.s32.totalorder %v558, 0
    %vm562 = vcmp.lt.s32.totalorder %v536, 0
    %vm563 = vcmp.lt.s32.totalorder %v547, 0
    %vm564 = vcmp.lt.s32.totalorder %v558, 0
    %vm565 = vmand %vm562, %vm559
    %vm566 = vmand %vm563, %vm560
    %vm567 = vmand %vm564, %vm561
    %v568 = vadd.s32 %v536, 3
    %v569 = vadd.s32 %v547, 3
    %v570 = vadd.s32 %v558, 3
    %v571 = vsel %vm565, %v568, %v536
    %v572 = vsel %vm566, %v569, %v547
    %v573 = vsel %vm567, %v570, %v558
    %vm574 = vcmp.eq.s32.totalorder %v571, 0
    %vm575 = vcmp.eq.s32.totalorder %v572, 0
    %vm576 = vcmp.eq.s32.totalorder %v573, 0
    %v577 = vand.u32 2147483647, %v519
    %vm578 = vcmp.le.f32.partialorder %v577, 0.7853982
    %vm579 = vcmp.lt.s32.totalorder %v519, 0
    %v580 = vand.u32 %v519, 2139095040
    %v581 = vshrl.u32 %v580, 23
    %v582 = vsub.s32 %v581, 127
    %v583 = vand.u32 2147483647, %v519
    %v584 = vand.u32 %v583, 8388607
    %v585 = vor.u32 %v584, 8388608
    %v586 = vsub.s32 0, %v585
    %v587 = vadd.s32 %v582, 1
    %vm588 = vcmp.gt.s32.totalorder %v587, 0
    %v589 = vsel %vm588, %v587, 0
    %v590 = vshrl.u32 %v589, 5
    %v591 = vand.u32 %v589, 31
    %v592 = vsub.s32 32, %v591
    %v593 = vshrl.u32 683565275, %v592
    %v594 = vshll.u32 683565275, %v591
    %v595 = vshrl.u32 2475754826, %v592
    %v596 = vor.u32 %v594, %v595
    %v597 = vshll.u32 2475754826, %v591
    %v598 = vshrl.u32 2131351028, %v592
    %v599 = vor.u32 %v597, %v598
    %v600 = vshll.u32 2131351028, %v591
    %v601 = vshrl.u32 2102212464, %v592
    %v602 = vor.u32 %v600, %v601
    %v603 = vshll.u32 2102212464, %v591
    %v604 = vshrl.u32 920167782, %v592
    %v605 = vor.u32 %v603, %v604
    %v606 = vshll.u32 920167782, %v591
    %v607 = vshrl.u32 1326507024, %v592
    %v608 = vor.u32 %v606, %v607
    %vm609 = vcmp.lt.s32.totalorder %v590, 1
    %vm610 = vcmp.lt.s32.totalorder %v590, 2
    %vm611 = vcmp.lt.s32.totalorder %v590, 3
    %vm612 = vcmp.lt.s32.totalorder %v590, 4
    %v613 = vsel %vm609, %v593, %v596
    %v614 = vsel %vm612, %v602, 2102212464
    %v615 = vsel %vm611, %v599, %v614
    %v616 = vsel %vm610, %v613, %v615
    %v617 = vsel %vm609, %v596, %v599
    %v618 = vsel %vm612, %v605, 920167782
    %v619 = vsel %vm611, %v602, %v618
    %v620 = vsel %vm610, %v617, %v619
    %v621 = vsel %vm609, %v599, %v602
    %v622 = vsel %vm612, %v608, 1326507024
    %v623 = vsel %vm611, %v605, %v622
    %v624 = vsel %vm610, %v621, %v623
    %v625 = vshll.u32 %v585, 8
    %v626 = vmul.u32.u64.compose %v625, %v624
    %v627 = vextract.low.u32 %v626
    %v628 = vextract.high.u32 %v626
    %v629 = vmul.u32.u64.compose %v625, %v620
    %v630 = vextract.low.u32 %v629
    %v631 = vextract.high.u32 %v629
    %v632 = vmul.u32 %v625, %v616
    %v633 = vadd.s32 %v628, %v630
    %vm634 = vc.u32 %v628, %v630
    %v635 = vadd.s32 %v631, 1
    %v636 = vsel %vm634, %v635, %v631
    %v637 = vadd.s32 %v632, %v636
    %v638 = vadd.s32 %v637, 536870912
    %v639 = vshrl.u32 %v638, 30
    %v640 = vshll.u32 %v639, 30
    %v641 = vsub.s32 %v637, %v640
    %vm642 = vcmp.lt.s32.totalorder %v641, 0
    %v643 = vsub.s32 0, %v641
    %v644 = vsel %vm642, %v643, %v641
    %v645 = vclz %v644
    %v646 = vsub.s32 %v645, 2
    %vm647 = vcmp.gt.s32.totalorder 0, %v646
    %v648 = vsel %vm647, 0, %v646
    %v649 = vsub.s32 32, %v648
    %v650 = vshll.u32 %v641, %v648
    %v651 = vshrl.u32 %v633, %v649
    %v652 = vor.u32 %v650, %v651
    %v653 = vsub.s32 4294967266, %v648
    %v654 = vadd.s32 %v653, 127
    %v655 = vshll.u32 %v654, 23
    %v656 = vor.u32 4788187, %v655
    %v657 = vand.u32 2147483647, %v656
    %v659 = vcvt.s32.f32 %v652
    %v660 = vmul.f32 %v659, %v657
    %v661 = vxor.u32 %v660, 2147483648
    %v662 = vsel %vm579, %v661, %v660
    %v663 = vsub.s32 4, %v639
    %v664 = vsel %vm579, %v663, %v639
    %v665 = vsel %vm578, %v519, %v662
    %v666 = vsel %vm578, 0, %v664
    %v667 = vcosq.f32.pop %v665
    %v668 = vsinq.f32.pop %v665
    %vm669 = vweird.f32 %v519
    %v670 = vadd.s32 %v666, 3
    %v671 = vand.u32 %v670, 3
    %vm672 = vcmp.lt.s32.totalorder %v671, 2
    %vm673 = vcmp.eq.s32.totalorder %v671, 0
    %v674 = vxor.u32 %v668, 2147483648
    %v675 = vsel %vm673, %v667, %v674
    %vm676 = vcmp.eq.s32.totalorder %v671, 2
    %v677 = vxor.u32 %v667, 2147483648
    %v678 = vsel %vm676, %v677, %v668
    %v679 = vsel %vm672, %v675, %v678
    %v680 = vsel %vm669, nan, %v679
    %v681 = vand.u32 2147483647, %v520
    %vm682 = vcmp.le.f32.partialorder %v681, 0.7853982
    %vm683 = vcmp.lt.s32.totalorder %v520, 0
    %v684 = vand.u32 %v520, 2139095040
    %v685 = vshrl.u32 %v684, 23
    %v686 = vsub.s32 %v685, 127
    %v687 = vand.u32 2147483647, %v520
    %v688 = vand.u32 %v687, 8388607
    %v689 = vor.u32 %v688, 8388608
    %v690 = vsub.s32 0, %v689
    %v691 = vadd.s32 %v686, 1
    %vm692 = vcmp.gt.s32.totalorder %v691, 0
    %v693 = vsel %vm692, %v691, 0
    %v694 = vshrl.u32 %v693, 5
    %v695 = vand.u32 %v693, 31
    %v696 = vsub.s32 32, %v695
    %v697 = vshrl.u32 683565275, %v696
    %v698 = vshll.u32 683565275, %v695
    %v699 = vshrl.u32 2475754826, %v696
    %v700 = vor.u32 %v698, %v699
    %v701 = vshll.u32 2475754826, %v695
    %v702 = vshrl.u32 2131351028, %v696
    %v703 = vor.u32 %v701, %v702
    %v704 = vshll.u32 2131351028, %v695
    %v705 = vshrl.u32 2102212464, %v696
    %v706 = vor.u32 %v704, %v705
    %v707 = vshll.u32 2102212464, %v695
    %v708 = vshrl.u32 920167782, %v696
    %v709 = vor.u32 %v707, %v708
    %v710 = vshll.u32 920167782, %v695
    %v711 = vshrl.u32 1326507024, %v696
    %v712 = vor.u32 %v710, %v711
    %vm713 = vcmp.lt.s32.totalorder %v694, 1
    %vm714 = vcmp.lt.s32.totalorder %v694, 2
    %vm715 = vcmp.lt.s32.totalorder %v694, 3
    %vm716 = vcmp.lt.s32.totalorder %v694, 4
    %v717 = vsel %vm713, %v697, %v700
    %v718 = vsel %vm716, %v706, 2102212464
    %v719 = vsel %vm715, %v703, %v718
    %v720 = vsel %vm714, %v717, %v719
    %v721 = vsel %vm713, %v700, %v703
    %v722 = vsel %vm716, %v709, 920167782
    %v723 = vsel %vm715, %v706, %v722
    %v724 = vsel %vm714, %v721, %v723
    %v725 = vsel %vm713, %v703, %v706
    %v726 = vsel %vm716, %v712, 1326507024
    %v727 = vsel %vm715, %v709, %v726
    %v728 = vsel %vm714, %v725, %v727
    %v729 = vshll.u32 %v689, 8
    %v730 = vmul.u32.u64.compose %v729, %v728
    %v731 = vextract.low.u32 %v730
    %v732 = vextract.high.u32 %v730
    %v733 = vmul.u32.u64.compose %v729, %v724
    %v734 = vextract.low.u32 %v733
    %v735 = vextract.high.u32 %v733
    %v736 = vmul.u32 %v729, %v720
    %v737 = vadd.s32 %v732, %v734
    %vm738 = vc.u32 %v732, %v734
    %v739 = vadd.s32 %v735, 1
    %v740 = vsel %vm738, %v739, %v735
    %v741 = vadd.s32 %v736, %v740
    %v742 = vadd.s32 %v741, 536870912
    %v743 = vshrl.u32 %v742, 30
    %v744 = vshll.u32 %v743, 30
    %v745 = vsub.s32 %v741, %v744
    %vm746 = vcmp.lt.s32.totalorder %v745, 0
    %v747 = vsub.s32 0, %v745
    %v748 = vsel %vm746, %v747, %v745
    %v749 = vclz %v748
    %v750 = vsub.s32 %v749, 2
    %vm751 = vcmp.gt.s32.totalorder 0, %v750
    %v752 = vsel %vm751, 0, %v750
    %v753 = vsub.s32 32, %v752
    %v754 = vshll.u32 %v745, %v752
    %v755 = vshrl.u32 %v737, %v753
    %v756 = vor.u32 %v754, %v755
    %v757 = vsub.s32 4294967266, %v752
    %v758 = vadd.s32 %v757, 127
    %v759 = vshll.u32 %v758, 23
    %v760 = vor.u32 4788187, %v759
    %v761 = vand.u32 2147483647, %v760
    %v763 = vcvt.s32.f32 %v756
    %v764 = vmul.f32 %v763, %v761
    %v765 = vxor.u32 %v764, 2147483648
    %v766 = vsel %vm683, %v765, %v764
    %v767 = vsub.s32 4, %v743
    %v768 = vsel %vm683, %v767, %v743
    %v769 = vsel %vm682, %v520, %v766
    %v770 = vsel %vm682, 0, %v768
    %v771 = vcosq.f32.pop %v769
    %v772 = vsinq.f32.pop %v769
    %vm773 = vweird.f32 %v520
    %v774 = vadd.s32 %v770, 3
    %v775 = vand.u32 %v774, 3
    %vm776 = vcmp.lt.s32.totalorder %v775, 2
    %vm777 = vcmp.eq.s32.totalorder %v775, 0
    %v778 = vxor.u32 %v772, 2147483648
    %v779 = vsel %vm777, %v771, %v778
    %vm780 = vcmp.eq.s32.totalorder %v775, 2
    %v781 = vxor.u32 %v771, 2147483648
    %v782 = vsel %vm780, %v781, %v772
    %v783 = vsel %vm776, %v779, %v782
    %v784 = vsel %vm773, nan, %v783
    %v785 = vand.u32 2147483647, %v521
    %vm786 = vcmp.le.f32.partialorder %v785, 0.7853982
    %vm787 = vcmp.lt.s32.totalorder %v521, 0
    %v788 = vand.u32 %v521, 2139095040
    %v789 = vshrl.u32 %v788, 23
    %v790 = vsub.s32 %v789, 127
    %v791 = vand.u32 2147483647, %v521
    %v792 = vand.u32 %v791, 8388607
    %v793 = vor.u32 %v792, 8388608
    %v794 = vsub.s32 0, %v793
    %v795 = vadd.s32 %v790, 1
    %vm796 = vcmp.gt.s32.totalorder %v795, 0
    %v797 = vsel %vm796, %v795, 0
    %v798 = vshrl.u32 %v797, 5
    %v799 = vand.u32 %v797, 31
    %v800 = vsub.s32 32, %v799
    %v801 = vshrl.u32 683565275, %v800
    %v802 = vshll.u32 683565275, %v799
    %v803 = vshrl.u32 2475754826, %v800
    %v804 = vor.u32 %v802, %v803
    %v805 = vshll.u32 2475754826, %v799
    %v806 = vshrl.u32 2131351028, %v800
    %v807 = vor.u32 %v805, %v806
    %v808 = vshll.u32 2131351028, %v799
    %v809 = vshrl.u32 2102212464, %v800
    %v810 = vor.u32 %v808, %v809
    %v811 = vshll.u32 2102212464, %v799
    %v812 = vshrl.u32 920167782, %v800
    %v813 = vor.u32 %v811, %v812
    %v814 = vshll.u32 920167782, %v799
    %v815 = vshrl.u32 1326507024, %v800
    %v816 = vor.u32 %v814, %v815
    %vm817 = vcmp.lt.s32.totalorder %v798, 1
    %vm818 = vcmp.lt.s32.totalorder %v798, 2
    %vm819 = vcmp.lt.s32.totalorder %v798, 3
    %vm820 = vcmp.lt.s32.totalorder %v798, 4
    %v821 = vsel %vm817, %v801, %v804
    %v822 = vsel %vm820, %v810, 2102212464
    %v823 = vsel %vm819, %v807, %v822
    %v824 = vsel %vm818, %v821, %v823
    %v825 = vsel %vm817, %v804, %v807
    %v826 = vsel %vm820, %v813, 920167782
    %v827 = vsel %vm819, %v810, %v826
    %v828 = vsel %vm818, %v825, %v827
    %v829 = vsel %vm817, %v807, %v810
    %v830 = vsel %vm820, %v816, 1326507024
    %v831 = vsel %vm819, %v813, %v830
    %v832 = vsel %vm818, %v829, %v831
    %v833 = vshll.u32 %v793, 8
    %v834 = vmul.u32.u64.compose %v833, %v832
    %v835 = vextract.low.u32 %v834
    %v836 = vextract.high.u32 %v834
    %v837 = vmul.u32.u64.compose %v833, %v828
    %v838 = vextract.low.u32 %v837
    %v839 = vextract.high.u32 %v837
    %v840 = vmul.u32 %v833, %v824
    %v841 = vadd.s32 %v836, %v838
    %vm842 = vc.u32 %v836, %v838
    %v843 = vadd.s32 %v839, 1
    %v844 = vsel %vm842, %v843, %v839
    %v845 = vadd.s32 %v840, %v844
    %v846 = vadd.s32 %v845, 536870912
    %v847 = vshrl.u32 %v846, 30
    %v848 = vshll.u32 %v847, 30
    %v849 = vsub.s32 %v845, %v848
    %vm850 = vcmp.lt.s32.totalorder %v849, 0
    %v851 = vsub.s32 0, %v849
    %v852 = vsel %vm850, %v851, %v849
    %v853 = vclz %v852
    %v854 = vsub.s32 %v853, 2
    %vm855 = vcmp.gt.s32.totalorder 0, %v854
    %v856 = vsel %vm855, 0, %v854
    %v857 = vsub.s32 32, %v856
    %v858 = vshll.u32 %v849, %v856
    %v859 = vshrl.u32 %v841, %v857
    %v860 = vor.u32 %v858, %v859
    %v861 = vsub.s32 4294967266, %v856
    %v862 = vadd.s32 %v861, 127
    %v863 = vshll.u32 %v862, 23
    %v864 = vor.u32 4788187, %v863
    %v865 = vand.u32 2147483647, %v864
    %v867 = vcvt.s32.f32 %v860
    %v868 = vmul.f32 %v867, %v865
    %v869 = vxor.u32 %v868, 2147483648
    %v870 = vsel %vm787, %v869, %v868
    %v871 = vsub.s32 4, %v847
    %v872 = vsel %vm787, %v871, %v847
    %v873 = vsel %vm786, %v521, %v870
    %v874 = vsel %vm786, 0, %v872
    %v875 = vcosq.f32.pop %v873
    %v876 = vsinq.f32.pop %v873
    %vm877 = vweird.f32 %v521
    %v878 = vadd.s32 %v874, 3
    %v879 = vand.u32 %v878, 3
    %vm880 = vcmp.lt.s32.totalorder %v879, 2
    %vm881 = vcmp.eq.s32.totalorder %v879, 0
    %v882 = vxor.u32 %v876, 2147483648
    %v883 = vsel %vm881, %v875, %v882
    %vm884 = vcmp.eq.s32.totalorder %v879, 2
    %v885 = vxor.u32 %v875, 2147483648
    %v886 = vsel %vm884, %v885, %v876
    %v887 = vsel %vm880, %v883, %v886
    %v888 = vsel %vm877, nan, %v887
    %v889 = vsel %vm574, %v519, %v680
    %v890 = vsel %vm575, %v520, %v784
    %v891 = vsel %vm576, %v521, %v888
    %892 = vst [vmem:[#allocation10] sm:$0xff] %v889
    %893 = vst [vmem:[#allocation10 + $0x8] sm:$0xff] %v890
    %894 = vst [vmem:[#allocation10 + $0x10] sm:$0xff] %v891
    // Predicated region
    $region34: #{tpu_custom_call.1} parent=1 // pred_check
      _
    $region35: #{tpu_custom_call.1} parent=1 // pred_check_branch
      %896 = sbr.rel (0) target = $region37
    $region36: #{tpu_custom_call.1} parent=1 // pred_region
      %s898 = ssub.s32 384, 384
      %899 = vsyncadd [#allocation4], %s898
      %s901 = sshll.u32 [#allocation10], 4
      %s902 = int_to_ptr.vmem [resolvable:$true] %s901
      %904 = dma.vmem_to_hbm [thread:$0]  %s902, 384, %s4, [#allocation4]
    $region37: #{tpu_custom_call.1} parent=1 // pred_fallthru
      _
    // Predicated region
    $region38: #{tpu_custom_call.1} parent=1 // pred_check
      _
    $region39: #{tpu_custom_call.1} parent=1 // pred_check_branch
      %906 = sbr.rel (0) target = $region41
    $region40: #{tpu_custom_call.1} parent=1 // pred_region
      %907 = dma.done [#allocation4], 384
    $region41: #{tpu_custom_call.1} parent=1 // pred_fallthru
      _
    %908 = vsyncpa [#allocation3], 1
    %909 = vsyncpa [#allocation6], 1
    %910 = vsyncpa [#allocation9], 1
    %911 = vsyncpa [#allocation4], 1

</llo_original>
